<compile_context>
chip_gen: v5e
topology: v5e:2x2
jax: 0.10.0
libtpu: 0.0.40
codegen_flags: <defaults>
</compile_context>

<pallas_src>
import functools
import math

import jax
import jax.numpy as jnp
from jax.experimental import pallas as pl
from jax.experimental.pallas import tpu as pltpu


# ----------------------------------------------------------------------------
# Small helpers
# ----------------------------------------------------------------------------
def _round_up(x, m):
    return ((x + m - 1) // m) * m


def _cdiv(a, b):
    return (a + b - 1) // b


def _split_dim(d, cap, align):
    """Tile size (multiple of `align`, <= cap when d > align) minimizing padding."""
    if d <= cap:
        return _round_up(d, align)
    n = _cdiv(d, cap)
    return _round_up(_cdiv(d, n), align)


def _tile_plan():
    """Generation-aware tile caps and VMEM budgets (bytes)."""
    vmem_phys = None
    try:
        vmem_phys = int(pltpu.get_tpu_info().vmem_capacity_bytes)
    except Exception:
        pass
    kind = ""
    try:
        kind = jax.devices()[0].device_kind.lower()
    except Exception:
        pass

    is_v7x = ("7" in kind) or (vmem_phys is not None and vmem_phys <= (96 << 20))
    is_v5e = ("v5" in kind) and not is_v7x

    if is_v7x:
        # 64 MiB VMEM, ~3.2 TB/s HBM: 1024x512 (~341 bf16-flops/byte) is already
        # compute-bound; keep the double-buffered working set well under 64 MiB.
        return dict(tm=1024, tn=512, tk=1024, vmem_limit=48 << 20, wres=8 << 20)
    if is_v5e:
        # 4x128 MXU, ~0.82 TB/s HBM: 512-wide tiles exceed the ~240 flops/byte
        # threshold; no need to pay for 1024+ tiles.
        return dict(tm=512, tn=512, tk=1024, vmem_limit=48 << 20, wres=12 << 20)
    # v6e (default): 918 TF/s vs ~1.3 TB/s HBM -> biggest tiles, raised limit.
    return dict(tm=1024, tn=1024, tk=1024, vmem_limit=64 << 20, wres=16 << 20)


def _pick_tm(M, cap, other_blocks):
    """Per-call M tile: bf16-sublane aligned, 256-aligned when large, and split
    so a (1,1,k) grid becomes (2,1,k) to feed both v7x TensorCores."""
    if M <= 256:
        tm = _round_up(max(M, 1), 16)
    else:
        tm = _split_dim(M, cap, 256)
    if other_blocks == 1 and _round_up(M, tm) == tm and tm >= 512:
        tm = _round_up(tm // 2, 256)
    return tm


# ----------------------------------------------------------------------------
# Kernels
# ----------------------------------------------------------------------------
def _stream_matmul_kernel(x_ref, w_ref, o_ref):
    """grid=(M//tm,): weight VMEM-resident (constant index_map -> DMA'd once),
    x / out streamed once over M.  x is cast to the compute dtype in-kernel."""
    o_ref[...] = jnp.dot(
        x_ref[...].astype(w_ref.dtype), w_ref[...],
        preferred_element_type=jnp.float32,
    ).astype(o_ref.dtype)


def _tiled_matmul_kernel_f32out(x_ref, w_ref, o_ref):
    """grid=(M//tm, N//tn, K//tk): the f32 output block doubles as the
    accumulator (same (i, j) index across k -> VMEM-resident)."""

    @pl.when(pl.program_id(2) == 0)
    def _():
        o_ref[...] = jnp.zeros_like(o_ref)

    o_ref[...] += jnp.dot(x_ref[...], w_ref[...],
                          preferred_element_type=jnp.float32)


def _tiled_matmul_kernel_scratch(x_ref, w_ref, o_ref, acc_ref):
    """Low-precision output: f32 VMEM scratch accumulator, cast in epilogue."""

    @pl.when(pl.program_id(2) == 0)
    def _():
        acc_ref[...] = jnp.zeros_like(acc_ref)

    acc_ref[...] += jnp.dot(x_ref[...], w_ref[...],
                            preferred_element_type=jnp.float32)

    @pl.when(pl.program_id(2) == pl.num_programs(2) - 1)
    def _():
        o_ref[...] = acc_ref[...].astype(o_ref.dtype)


# ----------------------------------------------------------------------------
# pallas_call wrapper
# ----------------------------------------------------------------------------
@functools.partial(
    jax.jit,
    static_argnames=("tm", "tk", "tn", "n_out", "out_dtype", "vmem_limit"),
)
def _pallas_matmul_2d(x2d, wp, *, tm, tk, tn, n_out, out_dtype, vmem_limit):
    """y = (x2d @ wp)[:M, :n_out].  wp is the pre-padded compute-dtype weight
    (Kp, Np) with tk | Kp and tn | Np."""
    M, K = x2d.shape
    Kp, Np = wp.shape
    Mp = _round_up(M, tm)

    if (Mp, Kp) != (M, K):
        x2d = jnp.pad(x2d, ((0, Mp - M), (0, Kp - K)))

    out_shape = jax.ShapeDtypeStruct((Mp, Np), out_dtype)
    out_bytes = Mp * Np * jnp.dtype(out_dtype).itemsize
    stream = (tk == Kp) and (tn == Np)

    if stream:
        bytes_accessed = (x2d.size * x2d.dtype.itemsize
                          + wp.size * wp.dtype.itemsize
                          + out_bytes)
        out = pl.pallas_call(
            _stream_matmul_kernel,
            out_shape=out_shape,
            grid_spec=pltpu.PrefetchScalarGridSpec(
                num_scalar_prefetch=0,
                grid=(Mp // tm,),
                in_specs=[
                    pl.BlockSpec((tm, Kp), lambda i: (i, 0)),
                    pl.BlockSpec((Kp, Np), lambda i: (0, 0)),  # resident weight
                ],
                out_specs=pl.BlockSpec((tm, Np), lambda i: (i, 0)),
            ),
            compiler_params=pltpu.CompilerParams(
                dimension_semantics=("parallel",),
                vmem_limit_bytes=vmem_limit,
            ),
            cost_estimate=pl.CostEstimate(
                flops=2 * Mp * Np * Kp, transcendentals=0,
                bytes_accessed=bytes_accessed),
        )(x2d, wp)
    else:
        grid = (Mp // tm, Np // tn, Kp // tk)
        f32_out = jnp.dtype(out_dtype) == jnp.dtype(jnp.float32)
        kernel = _tiled_matmul_kernel_f32out if f32_out else _tiled_matmul_kernel_scratch
        scratch = [] if f32_out else [pltpu.VMEM((tm, tn), jnp.float32)]
        bytes_accessed = (x2d.size * x2d.dtype.itemsize * grid[1]   # x re-read per j
                          + wp.size * wp.dtype.itemsize * grid[0]   # w re-read per i
                          + out_bytes)
        out = pl.pallas_call(
            kernel,
            out_shape=out_shape,
            grid_spec=pltpu.PrefetchScalarGridSpec(
                num_scalar_prefetch=0,
                grid=grid,
                in_specs=[
                    pl.BlockSpec((tm, tk), lambda i, j, k: (i, k)),
                    pl.BlockSpec((tk, tn), lambda i, j, k: (k, j)),
                ],
                out_specs=pl.BlockSpec((tm, tn), lambda i, j, k: (i, j)),
                scratch_shapes=scratch,
            ),
            compiler_params=pltpu.CompilerParams(
                dimension_semantics=("parallel", "parallel", "arbitrary"),
                vmem_limit_bytes=vmem_limit,
            ),
            cost_estimate=pl.CostEstimate(
                flops=2 * Mp * Np * Kp, transcendentals=0,
                bytes_accessed=bytes_accessed),
        )(x2d, wp)

    if (Mp, Np) != (M, n_out):
        out = out[:M, :n_out]
    return out


# ----------------------------------------------------------------------------
# Module
# ----------------------------------------------------------------------------
class TensorParallelLinear:
    """JAX/Pallas port of one shard of the (ray.remote) PyTorch TensorParallelLinear."""

    WORLD_SIZE = 2  # the original module hard-codes // 2

    def __init__(self, in_features, out_features, dimension, key,
                 param_dtype=jnp.float32, compute_dtype=jnp.bfloat16,
                 max_resident_weight_bytes=None, tile_caps=None):
        if dimension == 0:
            shape = (in_features, out_features // self.WORLD_SIZE)
        else:
            shape = (in_features // self.WORLD_SIZE, out_features)
        self.weight = jax.random.normal(key, shape, dtype=param_dtype)
        self.compute_dtype = compute_dtype

        K, N = shape
        plan = dict(_tile_plan())
        if tile_caps:
            plan.update(tile_caps)
        wres = plan["wres"] if max_resident_weight_bytes is None else max_resident_weight_bytes
        itemsize = jnp.dtype(compute_dtype).itemsize

        # Weight-resident single-pass mode if the padded shard + double-buffered
        # x/out tiles fit the scoped VMEM budget (typical TP shards do).
        Kp_s, Np_s = _round_up(K, 128), _round_up(N, 128)
        stream_ws = (2 * Kp_s * Np_s * itemsize       # weight (2 bufs, worst case)
                     + 2 * plan["tm"] * Kp_s * 4      # double-buffered x (f32 worst case)
                     + 2 * plan["tm"] * Np_s * 4)     # double-buffered f32 out
        if (Kp_s * Np_s * itemsize <= wres
                and stream_ws <= plan["vmem_limit"] - (4 << 20)):
            tk, tn = Kp_s, Np_s
        else:
            tk = _split_dim(K, plan["tk"], 128)
            tn = _split_dim(N, plan["tn"], 256 if N >= 256 else 128)
        Kp, Np = _round_up(K, tk), _round_up(N, tn)

        # Pre-cast + pre-pad the weight shard ONCE (hoisted out of forward).
        w = self.weight.astype(compute_dtype)
        if (Kp, Np) != (K, N):
            w = jnp.pad(w, ((0, Kp - K), (0, Np - N)))
        self._wp = w
        self._tk, self._tn = tk, tn
        self._stream = (tk == Kp and tn == Np)
        self._tm_cap = plan["tm"]
        self._vmem_limit = plan["vmem_limit"]
        # TODO(synk): the cross-shard all-gather (dim 0) / all-reduce (dim 1)
        # lives in the ray orchestration layer, not in this local matmul.

    def forward(self, x, force_pallas=False):
        K, N = self.weight.shape
        lead = x.shape[:-1]
        M = int(math.prod(lead))

        # Tiny problems: pallas_call launch overhead dominates -> plain matmul.
        if not force_pallas and M * K * N <= (1 << 15):
            y = jnp.matmul(x.astype(self.compute_dtype),
                           self.weight.astype(self.compute_dtype),
                           preferred_element_type=jnp.float32)
            return y.astype(x.dtype)

        x2d = x.reshape((-1, K))
        if not self._stream:
            # x is re-read Np/tn times in tiled mode -> pre-cast to bf16 once.
            x2d = x2d.astype(self.compute_dtype)
        # stream mode: keep x's dtype, the kernel casts the tile in-VMEM.

        tm = _pick_tm(M, self._tm_cap,
                      other_blocks=self._wp.shape[1] // self._tn)
        y2d = _pallas_matmul_2d(
            x2d, self._wp, tm=tm, tk=self._tk, tn=self._tn,
            n_out=N, out_dtype=x.dtype, vmem_limit=self._vmem_limit)
        return y2d.reshape(lead + (N,))

    __call__ = forward


# ----------------------------------------------------------------------------
# Self-test
# ----------------------------------------------------------------------------
if __name__ == "__main__":
    key = jax.random.PRNGKey(0)
    k_w0, k_w1, k_x, k_w2, k_x2, k_w3, k_x3 = jax.random.split(key, 7)

    def ref_matmul(x, w):
        # bf16-operand / f32-accumulate reference (same recipe as the kernel).
        return jnp.matmul(x.astype(jnp.bfloat16), w.astype(jnp.bfloat16),
                          preferred_element_type=jnp.float32)

    # ---- small shapes, matching the original toy module -------------------
    in_features, out_features = 32, 32
    batch, seq = 2, 8

    # dimension == 0 shard: weight (32, 16), x (2, 8, 32) -> y (2, 8, 16)
    shard_col = TensorParallelLinear(in_features, out_features, 0, k_w0)
    x_full = jax.random.normal(k_x, (batch, seq, in_features), dtype=jnp.float32)
    y_col = jax.block_until_ready(shard_col(x_full, force_pallas=True))

    # dimension == 1 shard: weight (16, 32), x (2, 8, 16) -> y (2, 8, 32)
    shard_row = TensorParallelLinear(in_features, out_features, 1, k_w1)
    x_half = x_full[..., : in_features // 2]
    y_row = jax.block_until_ready(shard_row(x_half, force_pallas=True))

    assert y_col.shape == (batch, seq, out_features // 2)
    assert y_row.shape == (batch, seq, out_features)
    assert jnp.allclose(y_col, ref_matmul(x_full, shard_col.weight),
                        atol=1e-2, rtol=1e-2)
    assert jnp.allclose(y_row, ref_matmul(x_half, shard_row.weight),
                        atol=1e-2, rtol=1e-2)

    # default routing for tiny problems goes to jnp.matmul; same answer.
    y_col_fast = jax.block_until_ready(shard_col(x_full))
    assert jnp.allclose(y_col_fast, y_col, atol=1e-2, rtol=1e-2)

    # ---- weight-resident (stream) path: weight (1024, 512) DMA'd once ------
    big = TensorParallelLinear(1024, 1024, 0, k_w2)
    x_big = jax.random.normal(k_x2, (2, 256, 1024), dtype=jnp.float32)
    y_big = jax.block_until_ready(big(x_big))
    assert y_big.shape == (2, 256, 512)
    ref_big = ref_matmul(x_big.reshape(-1, 1024), big.weight).reshape(2, 256, 512)
    assert jnp.allclose(y_big, ref_big, atol=5e-2, rtol=5e-2)

    # ---- tiled 3-D grid path (forced): exercises K accumulation ------------
    tiled = TensorParallelLinear(1024, 1024, 0, k_w3,
                                 max_resident_weight_bytes=0,
                                 tile_caps={"tm": 256, "tn": 256, "tk": 512})
    assert not tiled._stream
    x_t = jax.random.normal(k_x3, (2, 128, 1024), dtype=jnp.float32)
    y_t = jax.block_until_ready(tiled(x_t))                     # f32-out kernel
    ref_t = ref_matmul(x_t.reshape(-1, 1024), tiled.weight).reshape(2, 128, 512)
    assert y_t.shape == (2, 128, 512)
    assert jnp.allclose(y_t, ref_t, atol=5e-2, rtol=5e-2)

    y_t_bf16 = jax.block_until_ready(tiled(x_t.astype(jnp.bfloat16)))  # scratch kernel
    assert y_t_bf16.dtype == jnp.bfloat16
    assert jnp.allclose(y_t_bf16.astype(jnp.float32), ref_t, atol=0.5, rtol=5e-2)

    print("KERNEL_OK")
</pallas_src>

<mosaic_0001>
module attributes {stable_mosaic.version = 11 : i64} {
  func.func @_stream_matmul_kernel(%arg0: i32, %arg1: memref<16x128xf32, #tpu.memory_space<vmem>>, %arg2: memref<128x128xbf16, #tpu.memory_space<vmem>>, %arg3: memref<16x128xf32, #tpu.memory_space<vmem>>) attributes {dimension_semantics = [#tpu.dimension_semantics<parallel>], iteration_bounds = array<i64: 1>, scalar_prefetch = 0 : i64, scratch_operands = 0 : i64, tpu.core_type = #tpu.core_type<tc>, window_params = [{transform_indices = @transform_0, window_bounds = array<i64: 16, 128>}, {pipeline_mode = #tpu.pipeline_mode<synchronous>, transform_indices = @transform_1, window_bounds = array<i64: 128, 128>}, {transform_indices = @transform_2, window_bounds = array<i64: 16, 128>}]} {
    %c0 = arith.constant 0 : index
    %c0_0 = arith.constant 0 : index
    %0 = vector.load %arg1[%c0, %c0_0] : memref<16x128xf32, #tpu.memory_space<vmem>>, vector<16x128xf32>
    %1 = arith.truncf %0 : vector<16x128xf32> to vector<16x128xbf16>
    %c0_1 = arith.constant 0 : index
    %c0_2 = arith.constant 0 : index
    %2 = vector.load %arg2[%c0_1, %c0_2] : memref<128x128xbf16, #tpu.memory_space<vmem>>, vector<128x128xbf16>
    %cst = arith.constant dense<0.000000e+00> : vector<16x128xf32>
    %3 = tpu.matmul %1, %2, %cst {dimension_numbers = #tpu.dot_dimension_numbers<[1], [0], [0], [1], [0, 0, 1, 1], [], []>} : vector<16x128xbf16>, vector<128x128xbf16>, vector<16x128xf32> -> vector<16x128xf32>
    %c0_3 = arith.constant 0 : index
    %c0_4 = arith.constant 0 : index
    %4 = vector.load %arg3[%c0_3, %c0_4] : memref<16x128xf32, #tpu.memory_space<vmem>>, vector<16x128xf32>
    tpu.vector_store %arg3[%c0_3, %c0_4], %3 {strides = array<i32>} : memref<16x128xf32, #tpu.memory_space<vmem>>, vector<16x128xf32>,
    return
  }
  func.func @transform_0(%arg0: i32) -> (i32, i32) {
    %c0_i32 = arith.constant 0 : i32
    %c0_i32_0 = arith.constant 0 : i32
    return %arg0, %c0_i32 : i32, i32
  }
  func.func @transform_1(%arg0: i32) -> (i32, i32) {
    %c0_i32 = arith.constant 0 : i32
    %c0_i32_0 = arith.constant 0 : i32
    %c0_i32_1 = arith.constant 0 : i32
    return %c0_i32, %c0_i32_0 : i32, i32
  }
  func.func @transform_2(%arg0: i32) -> (i32, i32) {
    %c0_i32 = arith.constant 0 : i32
    %c0_i32_0 = arith.constant 0 : i32
    return %arg0, %c0_i32 : i32, i32
  }
}

</mosaic_0001>

<llo_original>
// kernel: _pallas_matmul_2d.1
$region0: #{_pallas_matmul_2d.1}
  #allocation0 [shape = 'u32[]', space=smem, size = 0x4, offset = 0x4, fixed_abs, tag = 'smem constant byte address 0x4 - core index']
  #allocation1 [shape = 'u32[72,128]{1,0:T(1,128)}', space=vmem, size = 0x9000, scoped, tag = 'internal scratch']
  %s0 = inlined_call_operand.vmem [shape: f32[16,128], index: 0, kind: input, shape index: {}]
  %s1 = inlined_call_operand.hbm [shape: bf16[128,128], index: 1, kind: input, shape index: {}]
  %s2 = inlined_call_operand.hbm [shape: f32[16,128], index: 2, kind: output, shape index: {}]
  %s3 = sld [smem:[#allocation0]]
  $region22: #{_pallas_matmul_2d.1} parent=0
    _
  %s5 = ssub.s32 1, %s3
  %s6 = scalar_select 0, %s5, %s3
  $region1: #{_pallas_matmul_2d.1} parent=0
    #allocation2 [shape = 'u8[32768]{0}', space=vmem, size = 0x8000, scoped, tag = 'input window, operand 1, single buffered']
    #allocation3 [shape = 's32[1]{0}', space=sflag, size = 0x4, scoped, tag = 'scoped memory for _pallas_matmul_2d.1']
    #allocation4 [shape = 's32[1]{0}', space=sflag, size = 0x4, scoped, tag = 'scoped memory for _pallas_matmul_2d.1']
    #allocation5 [shape = 'u8[8192]{0}', space=vmem, size = 0x2000, scoped, tag = 'output window, operand 0, single buffered']
    %7 = vsyncpa [#allocation3], 0
    %8 = vsyncpa [#allocation4], 0
    // Predicated region
    $region2: #{_pallas_matmul_2d.1} parent=1 // pred_check
      _
    $region3: #{_pallas_matmul_2d.1} parent=1 // pred_check_branch
      %10 = sbr.rel (0) target = $region5
    $region4: #{_pallas_matmul_2d.1} parent=1 // pred_region
      _
    $region5: #{_pallas_matmul_2d.1} parent=1 // pred_fallthru
      _
    // Predicated region
    $region6: #{_pallas_matmul_2d.1} parent=1 // pred_check
      _
    $region7: #{_pallas_matmul_2d.1} parent=1 // pred_check_branch
      %12 = sbr.rel (0) target = $region9
    $region8: #{_pallas_matmul_2d.1} parent=1 // pred_region
      %14 = vsyncadd [#allocation3], 0
      %s15 = sshll.u32 %s1, 4
      %s16 = int_to_ptr.hbm [resolvable:$true] %s15
      %s17 = sshll.u32 [#allocation2], 4
      %s18 = int_to_ptr.vmem [resolvable:$true] %s17
      %23 = dma.hbm_to_vmem [thread:$0]  %s16, 1024, %s18, [#allocation3], 64, 64, 4
    $region9: #{_pallas_matmul_2d.1} parent=1 // pred_fallthru
      _
    // Predicated region
    $region10: #{_pallas_matmul_2d.1} parent=1 // pred_check
      _
    $region11: #{_pallas_matmul_2d.1} parent=1 // pred_check_branch
      %25 = sbr.rel (0) target = $region13
    $region12: #{_pallas_matmul_2d.1} parent=1 // pred_region
      %27 = dma.done [#allocation3], 1024
    $region13: #{_pallas_matmul_2d.1} parent=1 // pred_fallthru
      _
    %v28 = vld [vmem:[%s0] sm:$0xff]
    %v29 = vld [vmem:[%s0 + $0x8] sm:$0xff]
    %v30 = vpack.c.bf16 %v29, %v28
    %v31 = vld [vmem:[#allocation2] sm:$0xf]
    %v32 = vld [vmem:[#allocation2 + $0x4] sm:$0xf]
    %v33 = vld [vmem:[#allocation2 + $0x8] sm:$0xf]
    %v34 = vld [vmem:[#allocation2 + $0xc] sm:$0xf]
    %v35 = vld [vmem:[#allocation2 + $0x10] sm:$0xf]
    %v36 = vld [vmem:[#allocation2 + $0x14] sm:$0xf]
    %v37 = vld [vmem:[#allocation2 + $0x18] sm:$0xf]
    %v38 = vld [vmem:[#allocation2 + $0x1c] sm:$0xf]
    %v39 = vld [vmem:[#allocation2 + $0x20] sm:$0xf]
    %v40 = vld [vmem:[#allocation2 + $0x24] sm:$0xf]
    %v41 = vld [vmem:[#allocation2 + $0x28] sm:$0xf]
    %v42 = vld [vmem:[#allocation2 + $0x2c] sm:$0xf]
    %v43 = vld [vmem:[#allocation2 + $0x30] sm:$0xf]
    %v44 = vld [vmem:[#allocation2 + $0x34] sm:$0xf]
    %v45 = vld [vmem:[#allocation2 + $0x38] sm:$0xf]
    %v46 = vld [vmem:[#allocation2 + $0x3c] sm:$0xf]
    %v63 = vunpack.c.l.b16 %v31
    %v64 = vunpack.c.l.b16 %v32
    %v65 = vunpack.c.l.b16 %v33
    %v66 = vunpack.c.l.b16 %v34
    %v67 = vunpack.c.l.b16 %v35
    %v68 = vunpack.c.l.b16 %v36
    %v69 = vunpack.c.l.b16 %v37
    %v70 = vunpack.c.l.b16 %v38
    %v71 = vunpack.c.l.b16 %v39
    %v72 = vunpack.c.l.b16 %v40
    %v73 = vunpack.c.l.b16 %v41
    %v74 = vunpack.c.l.b16 %v42
    %v75 = vunpack.c.l.b16 %v43
    %v76 = vunpack.c.l.b16 %v44
    %v77 = vunpack.c.l.b16 %v45
    %v78 = vunpack.c.l.b16 %v46
    %v79 = vpack.c.b16 %v64, %v63
    %v80 = vpack.c.b16 %v66, %v65
    %v81 = vpack.c.b16 %v68, %v67
    %v82 = vpack.c.b16 %v70, %v69
    %v83 = vpack.c.b16 %v72, %v71
    %v84 = vpack.c.b16 %v74, %v73
    %v85 = vpack.c.b16 %v76, %v75
    %v86 = vpack.c.b16 %v78, %v77
    %95 = vmatpush.bf16.msra.mxu0 %v86
    %96 = vmatpush.bf16.msra.mxu0 %v85
    %97 = vmatpush.bf16.msra.mxu0 %v84
    %98 = vmatpush.bf16.msra.mxu0 %v83
    %99 = vmatpush.bf16.msra.mxu0 %v82
    %100 = vmatpush.bf16.msra.mxu0 %v81
    %101 = vmatpush.bf16.msra.mxu0 %v80
    %102 = vmatpush.bf16.msra.mxu0 %v79
    %103 = vmatmul.bf16.gmra.mxu0 %v30
    %v104 = vpop.f32.mrf.mxu0
    %v105 = vadd.f32 0.0, %v104
    %v106 = vpop.f32.mrf.mxu0
    %v107 = vadd.f32 0.0, %v106
    %108 = vdwg.mxu0
    %109 = vst [vmem:[#allocation5] sm:$0xff] %v105
    %110 = vst [vmem:[#allocation5 + $0x8] sm:$0xff] %v107
    // Predicated region
    $region14: #{_pallas_matmul_2d.1} parent=1 // pred_check
      _
    $region15: #{_pallas_matmul_2d.1} parent=1 // pred_check_branch
      %112 = sbr.rel (0) target = $region17
    $region16: #{_pallas_matmul_2d.1} parent=1 // pred_region
      %114 = vsyncadd [#allocation4], 0
      %s115 = sshll.u32 [#allocation5], 4
      %s116 = int_to_ptr.vmem [resolvable:$true] %s115
      %s117 = sshll.u32 %s2, 4
      %s118 = int_to_ptr.hbm [resolvable:$true] %s117
      %123 = dma.vmem_to_hbm [thread:$0]  %s116, 256, %s118, [#allocation4], 128, 128, 8
    $region17: #{_pallas_matmul_2d.1} parent=1 // pred_fallthru
      _
    // Predicated region
    $region18: #{_pallas_matmul_2d.1} parent=1 // pred_check
      _
    $region19: #{_pallas_matmul_2d.1} parent=1 // pred_check_branch
      %125 = sbr.rel (0) target = $region21
    $region20: #{_pallas_matmul_2d.1} parent=1 // pred_region
      %127 = dma.done [#allocation4], 256
    $region21: #{_pallas_matmul_2d.1} parent=1 // pred_fallthru
      _
    %128 = vsyncpa [#allocation3], 1
    %129 = vsyncpa [#allocation4], 1

</llo_original>
